<compile_context>
chip_gen: v7x
topology: tpu7x:2x2x1
jax: 0.10.0
libtpu: 0.0.40
codegen_flags: <defaults>
</compile_context>

<pallas_src>
import jax
import jax.numpy as jnp
import numpy as np
from jax.experimental import pallas as pl
from jax.experimental.pallas import tpu as pltpu

LAM = 0.5          # self.lam
EPS = 1e-8


# ---------------------------------------------------------------------------
# Fused kernel: per grid step, TB batch elements (R = TB*K neighbour rows):
#   hv      = rows @ Wv                       (R, Dm)
#   hq      = q @ Wq  (B-deduplicated)        (TB, Dm) -> broadcast to (R, Dm)
#   logits  = tanh(hv*hq) @ Wc                (R, A)
#   nb      = softmax(logits) over answers
#   score   = lam*(emb_pairs[aid].nb - nb[aid]) - (1-lam)*log(nb[aid]+eps)
#   out     = softmax(score) over the K neighbours of each batch element
# ---------------------------------------------------------------------------
def fused_semantic_kernel(v_ref, q_ref, aid_ref, sim_ref,
                          wv_ref, wq_ref, wc_ref, out_ref):
    TB, K, _ = out_ref.shape           # output block is (TB, K, 1)
    R = TB * K                         # neighbour rows handled this step
    A = wc_ref.shape[1]

    # 0/1 expansion matrix: expand[r, t] = 1 iff row r belongs to batch element t.
    # Broadcasts per-batch quantities (hq, sim) to the R rows via a tiny MXU matmul,
    # avoiding duplicated HBM traffic and any in-kernel reshapes.
    r_idx = jax.lax.broadcasted_iota(jnp.int32, (R, TB), 0)
    t_idx = jax.lax.broadcasted_iota(jnp.int32, (R, TB), 1)
    expand = ((r_idx >= t_idx * K) & (r_idx < (t_idx + 1) * K)).astype(jnp.float32)

    # --- vqa_model._fusion : tanh((v @ Wv) * (q @ Wq)) ---
    hv = jnp.dot(v_ref[...], wv_ref[...], preferred_element_type=jnp.float32)   # (R, Dm)
    hq = jnp.dot(q_ref[...], wq_ref[...], preferred_element_type=jnp.float32)   # (TB, Dm)
    hq_rep = jnp.dot(expand, hq, preferred_element_type=jnp.float32)            # (R, Dm)
    z = jnp.tanh(hv * hq_rep)

    # --- vqa_model._classif + softmax over the answer vocabulary ---
    logits = jnp.dot(z, wc_ref[...], preferred_element_type=jnp.float32)        # (R, A)
    m = jnp.max(logits, axis=-1, keepdims=True)
    e = jnp.exp(logits - m)
    nb = e / jnp.sum(e, axis=-1, keepdims=True)                                 # (R, A)

    # --- semantic scoring ---
    sim_rep = jnp.dot(expand, sim_ref[...], preferred_element_type=jnp.float32) # (R, A)
    weighted = jnp.sum(nb * sim_rep, axis=-1, keepdims=True)                    # (R, 1)

    col = jax.lax.broadcasted_iota(jnp.int32, (R, A), 1)
    p_aid = jnp.sum(jnp.where(col == aid_ref[...], nb, 0.0),
                    axis=-1, keepdims=True)                                     # (R, 1) = nb[aid]

    score = LAM * (weighted - p_aid) - (1.0 - LAM) * jnp.log(p_aid + EPS)       # (R, 1)

    # softmax over the K neighbours of each batch element (TB is a trace-time constant)
    for t in range(TB):
        s = score[t * K:(t + 1) * K, :]                                         # (K, 1)
        smax = jnp.max(s, axis=0, keepdims=True)
        es = jnp.exp(s - smax)
        out_ref[t] = es / jnp.sum(es, axis=0, keepdims=True)


def _pick_tb(B):
    """Batch-tile size: smallest divisor of B that is a multiple of 8 (keeps all 2-D
    block shapes legal and sublanes full while leaving grid steps for pipelining /
    megacore).  Falls back to the whole batch in one step (block == full dims)."""
    for tb in range(8, B, 8):
        if B % tb == 0:
            return tb
    return B


# ---------------------------------------------------------------------------
# Full SemanticBaseline.forward  (glue in plain JAX, hot path in one Pallas kernel)
# ---------------------------------------------------------------------------
def semantic_baseline_forward(image_features, question_wids, answer_aids, params):
    B, Kp1, Dv = image_features.shape
    K = Kp1 - 1
    Dq = params["Wq"].shape[0]
    A = params["Wc"].shape[1]

    # --- vqa_forward glue (plain JAX): seq2vec = embedding lookup + mean ---
    q_emb = jnp.mean(params["word_emb"][question_wids], axis=1)          # (B, Dq)

    # only the K neighbour rows are used downstream (a[:, 0, :] / z are discarded)
    v_knn = image_features[:, 1:, :].reshape(B * K, Dv)                  # (B*K, Dv)

    # tiny per-batch gathers stay in XLA: emb_pairs row + answer id per neighbour row
    sim_rows = params["emb_pairs"][answer_aids]                          # (B, A)
    aid_rows = jnp.repeat(answer_aids.astype(jnp.int32), K).reshape(B * K, 1)

    TB = _pick_tb(B)
    grid = (B // TB,)

    out = pl.pallas_call(
        fused_semantic_kernel,
        out_shape=jax.ShapeDtypeStruct((B, K, 1), jnp.float32),
        grid_spec=pltpu.PrefetchScalarGridSpec(
            num_scalar_prefetch=0,
            grid=grid,
            in_specs=[
                pl.BlockSpec((TB * K, Dv), lambda g: (g, 0)),            # neighbour features
                pl.BlockSpec((TB, Dq), lambda g: (g, 0)),                # de-duplicated q
                pl.BlockSpec((TB * K, 1), lambda g: (g, 0)),             # answer id per row
                pl.BlockSpec((TB, A), lambda g: (g, 0)),                 # emb_pairs[aid] rows
                pl.BlockSpec(params["Wv"].shape, lambda g: (0, 0)),      # VMEM-resident weights
                pl.BlockSpec(params["Wq"].shape, lambda g: (0, 0)),
                pl.BlockSpec(params["Wc"].shape, lambda g: (0, 0)),
            ],
            out_specs=pl.BlockSpec((TB, K, 1), lambda g: (g, 0, 0)),
        ),
        compiler_params=pltpu.CompilerParams(
            dimension_semantics=("parallel",),       # megacore-shardable batch axis (v7x)
            vmem_limit_bytes=32 * 1024 * 1024,
        ),
    )(v_knn, q_emb, aid_rows, sim_rows, params["Wv"], params["Wq"], params["Wc"])

    return out[:, :, 0]                                                  # (B, K)


# ---------------------------------------------------------------------------
# Pure-JAX reference for verification
# ---------------------------------------------------------------------------
def reference_forward(image_features, question_wids, answer_aids, params):
    B, Kp1, Dv = image_features.shape
    v_emb = image_features.reshape(B * Kp1, Dv)
    q_emb = jnp.mean(params["word_emb"][question_wids], axis=1)
    q_emb_dup = jnp.broadcast_to(q_emb[:, None, :], (B, Kp1, q_emb.shape[-1]))
    q_emb_dup = q_emb_dup.reshape(B * Kp1, -1)
    z = jnp.tanh((v_emb @ params["Wv"]) * (q_emb_dup @ params["Wq"]))
    a = (z @ params["Wc"]).reshape(B, Kp1, -1)
    a_knns = a[:, 1:, :]
    nb = jax.nn.softmax(a_knns, axis=-1)                                   # (B, K, A)
    sim_rows = params["emb_pairs"][answer_aids]                            # (B, A)
    p_aid = jnp.take_along_axis(nb, answer_aids[:, None, None], axis=-1)[..., 0]
    weighted_sim = jnp.einsum("bka,ba->bk", nb, sim_rows) - p_aid
    logp = jnp.log(p_aid + EPS)
    score = LAM * weighted_sim - (1.0 - LAM) * logp
    return jax.nn.softmax(score, axis=-1)


if __name__ == "__main__":
    # small shapes consistent with the module's dataflow
    B, KNN, Dv, Dq, Dm, A, SEQ, VOCAB, De = 2, 4, 32, 32, 32, 128, 8, 50, 16
    Kp1 = KNN + 1

    key = jax.random.PRNGKey(0)
    ks = jax.random.split(key, 8)

    params = {
        "word_emb": jax.random.normal(ks[0], (VOCAB, Dq), jnp.float32) * 0.1,
        "Wv": jax.random.normal(ks[1], (Dv, Dm), jnp.float32) * 0.2,
        "Wq": jax.random.normal(ks[2], (Dq, Dm), jnp.float32) * 0.2,
        "Wc": jax.random.normal(ks[3], (Dm, A), jnp.float32) * 0.2,
    }
    # set_answer_embedding: emb (A, De); emb_pairs = cosine_similarity(emb)
    ans_emb = jax.random.normal(ks[4], (A, De), jnp.float32)
    ans_emb_n = ans_emb / jnp.linalg.norm(ans_emb, axis=-1, keepdims=True)
    params["emb_pairs"] = ans_emb_n @ ans_emb_n.T                          # (A, A)

    image_features = jax.random.normal(ks[5], (B, Kp1, Dv), jnp.float32)
    question_wids = jax.random.randint(ks[6], (B, SEQ), 0, VOCAB)
    answer_aids = jax.random.randint(ks[7], (B,), 0, A)

    out = semantic_baseline_forward(image_features, question_wids, answer_aids, params)
    out = jax.block_until_ready(out)

    ref = reference_forward(image_features, question_wids, answer_aids, params)
    np.testing.assert_allclose(np.asarray(out), np.asarray(ref), rtol=1e-5, atol=1e-5)
    assert out.shape == (B, KNN)

    print("KERNEL_OK")
</pallas_src>

<mosaic_0001>
module attributes {stable_mosaic.version = 11 : i64} {
  func.func @fused_semantic_kernel(%arg0: i32, %arg1: memref<8x32xf32, #tpu.memory_space<vmem>>, %arg2: memref<2x32xf32, #tpu.memory_space<vmem>>, %arg3: memref<8x1xi32, #tpu.memory_space<vmem>>, %arg4: memref<2x128xf32, #tpu.memory_space<vmem>>, %arg5: memref<32x32xf32, #tpu.memory_space<vmem>>, %arg6: memref<32x32xf32, #tpu.memory_space<vmem>>, %arg7: memref<32x128xf32, #tpu.memory_space<vmem>>, %arg8: memref<2x4x1xf32, #tpu.memory_space<vmem>>) attributes {dimension_semantics = [#tpu.dimension_semantics<parallel>], iteration_bounds = array<i64: 1>, scalar_prefetch = 0 : i64, scratch_operands = 0 : i64, tpu.core_type = #tpu.core_type<tc>, window_params = [{transform_indices = @transform_0, window_bounds = array<i64: 8, 32>}, {transform_indices = @transform_1, window_bounds = array<i64: 2, 32>}, {transform_indices = @transform_2, window_bounds = array<i64: 8, 1>}, {transform_indices = @transform_3, window_bounds = array<i64: 2, 128>}, {pipeline_mode = #tpu.pipeline_mode<synchronous>, transform_indices = @transform_4, window_bounds = array<i64: 32, 32>}, {pipeline_mode = #tpu.pipeline_mode<synchronous>, transform_indices = @transform_5, window_bounds = array<i64: 32, 32>}, {pipeline_mode = #tpu.pipeline_mode<synchronous>, transform_indices = @transform_6, window_bounds = array<i64: 32, 128>}, {transform_indices = @transform_7, window_bounds = array<i64: 2, 4, 1>}]} {
    %0 = tpu.iota {dimensions = array<i32: 0>} : vector<8x2xi32>
    %1 = tpu.iota {dimensions = array<i32: 1>} : vector<8x2xi32>
    %c4_i32 = arith.constant 4 : i32
    %2 = vector.broadcast %c4_i32 : i32 to vector<8x2xi32>
    %3 = arith.muli %1, %2 : vector<8x2xi32>
    %4 = arith.cmpi sge, %0, %3 : vector<8x2xi32>
    %c1_i32 = arith.constant 1 : i32
    %5 = vector.broadcast %c1_i32 : i32 to vector<8x2xi32>
    %6 = arith.addi %1, %5 : vector<8x2xi32>
    %c4_i32_0 = arith.constant 4 : i32
    %7 = vector.broadcast %c4_i32_0 : i32 to vector<8x2xi32>
    %8 = arith.muli %6, %7 : vector<8x2xi32>
    %9 = arith.cmpi slt, %0, %8 : vector<8x2xi32>
    %10 = arith.andi %4, %9 : vector<8x2xi1>
    %11 = arith.extui %10 : vector<8x2xi1> to vector<8x2xi32>
    %12 = arith.sitofp %11 : vector<8x2xi32> to vector<8x2xf32>
    %c0 = arith.constant 0 : index
    %c0_1 = arith.constant 0 : index
    %13 = vector.load %arg1[%c0, %c0_1] : memref<8x32xf32, #tpu.memory_space<vmem>>, vector<8x32xf32>
    %c0_2 = arith.constant 0 : index
    %c0_3 = arith.constant 0 : index
    %14 = vector.load %arg5[%c0_2, %c0_3] : memref<32x32xf32, #tpu.memory_space<vmem>>, vector<32x32xf32>
    %cst = arith.constant dense<0.000000e+00> : vector<8x32xf32>
    %15 = tpu.matmul %13, %14, %cst {dimension_numbers = #tpu.dot_dimension_numbers<[1], [0], [0], [1], [0, 0, 1, 1], [], []>} : vector<8x32xf32>, vector<32x32xf32>, vector<8x32xf32> -> vector<8x32xf32>
    %c0_4 = arith.constant 0 : index
    %c0_5 = arith.constant 0 : index
    %16 = vector.load %arg2[%c0_4, %c0_5] : memref<2x32xf32, #tpu.memory_space<vmem>>, vector<2x32xf32>
    %c0_6 = arith.constant 0 : index
    %c0_7 = arith.constant 0 : index
    %17 = vector.load %arg6[%c0_6, %c0_7] : memref<32x32xf32, #tpu.memory_space<vmem>>, vector<32x32xf32>
    %cst_8 = arith.constant dense<0.000000e+00> : vector<2x32xf32>
    %18 = tpu.matmul %16, %17, %cst_8 {dimension_numbers = #tpu.dot_dimension_numbers<[1], [0], [0], [1], [0, 0, 1, 1], [], []>} : vector<2x32xf32>, vector<32x32xf32>, vector<2x32xf32> -> vector<2x32xf32>
    %cst_9 = arith.constant dense<0.000000e+00> : vector<8x32xf32>
    %19 = tpu.matmul %12, %18, %cst_9 {dimension_numbers = #tpu.dot_dimension_numbers<[1], [0], [0], [1], [0, 0, 1, 1], [], []>} : vector<8x2xf32>, vector<2x32xf32>, vector<8x32xf32> -> vector<8x32xf32>
    %20 = arith.mulf %15, %19 : vector<8x32xf32>
    %21 = math.tanh %20 : vector<8x32xf32>
    %c0_10 = arith.constant 0 : index
    %c0_11 = arith.constant 0 : index
    %22 = vector.load %arg7[%c0_10, %c0_11] : memref<32x128xf32, #tpu.memory_space<vmem>>, vector<32x128xf32>
    %cst_12 = arith.constant dense<0.000000e+00> : vector<8x128xf32>
    %23 = tpu.matmul %21, %22, %cst_12 {dimension_numbers = #tpu.dot_dimension_numbers<[1], [0], [0], [1], [0, 0, 1, 1], [], []>} : vector<8x32xf32>, vector<32x128xf32>, vector<8x128xf32> -> vector<8x128xf32>
    %cst_13 = arith.constant dense<0xFF800000> : vector<8xf32>
    %24 = vector.multi_reduction <maximumf>, %23, %cst_13 [1] : vector<8x128xf32> to vector<8xf32>
    %25 = vector.shape_cast %24 : vector<8xf32> to vector<8x1xf32>
    %26 = vector.broadcast %25 : vector<8x1xf32> to vector<8x128xf32>
    %27 = arith.subf %23, %26 : vector<8x128xf32>
    %28 = math.exp %27 : vector<8x128xf32>
    %cst_14 = arith.constant dense<0.000000e+00> : vector<8xf32>
    %29 = vector.multi_reduction <add>, %28, %cst_14 [1] : vector<8x128xf32> to vector<8xf32>
    %30 = vector.shape_cast %29 : vector<8xf32> to vector<8x1xf32>
    %31 = vector.broadcast %30 : vector<8x1xf32> to vector<8x128xf32>
    %32 = arith.divf %28, %31 : vector<8x128xf32>
    %c0_15 = arith.constant 0 : index
    %c0_16 = arith.constant 0 : index
    %33 = vector.load %arg4[%c0_15, %c0_16] : memref<2x128xf32, #tpu.memory_space<vmem>>, vector<2x128xf32>
    %cst_17 = arith.constant dense<0.000000e+00> : vector<8x128xf32>
    %34 = tpu.matmul %12, %33, %cst_17 {dimension_numbers = #tpu.dot_dimension_numbers<[1], [0], [0], [1], [0, 0, 1, 1], [], []>} : vector<8x2xf32>, vector<2x128xf32>, vector<8x128xf32> -> vector<8x128xf32>
    %35 = arith.mulf %32, %34 : vector<8x128xf32>
    %cst_18 = arith.constant dense<0.000000e+00> : vector<8xf32>
    %36 = vector.multi_reduction <add>, %35, %cst_18 [1] : vector<8x128xf32> to vector<8xf32>
    %37 = vector.shape_cast %36 : vector<8xf32> to vector<8x1xf32>
    %38 = tpu.iota {dimensions = array<i32: 1>} : vector<8x128xi32>
    %c0_19 = arith.constant 0 : index
    %c0_20 = arith.constant 0 : index
    %39 = vector.load %arg3[%c0_19, %c0_20] : memref<8x1xi32, #tpu.memory_space<vmem>>, vector<8x1xi32>
    %40 = vector.broadcast %39 : vector<8x1xi32> to vector<8x128xi32>
    %41 = arith.cmpi eq, %38, %40 : vector<8x128xi32>
    %cst_21 = arith.constant 0.000000e+00 : f32
    %42 = vector.broadcast %cst_21 : f32 to vector<8x128xf32>
    %43 = arith.select %41, %32, %42 : vector<8x128xi1>, vector<8x128xf32>
    %cst_22 = arith.constant dense<0.000000e+00> : vector<8xf32>
    %44 = vector.multi_reduction <add>, %43, %cst_22 [1] : vector<8x128xf32> to vector<8xf32>
    %45 = vector.shape_cast %44 : vector<8xf32> to vector<8x1xf32>
    %46 = arith.subf %37, %45 : vector<8x1xf32>
    %cst_23 = arith.constant 5.000000e-01 : f32
    %47 = vector.broadcast %cst_23 : f32 to vector<8x1xf32>
    %48 = arith.mulf %47, %46 : vector<8x1xf32>
    %cst_24 = arith.constant 9.99999993E-9 : f32
    %49 = vector.broadcast %cst_24 : f32 to vector<8x1xf32>
    %50 = arith.addf %45, %49 : vector<8x1xf32>
    %51 = math.log %50 : vector<8x1xf32>
    %cst_25 = arith.constant 5.000000e-01 : f32
    %52 = vector.broadcast %cst_25 : f32 to vector<8x1xf32>
    %53 = arith.mulf %52, %51 : vector<8x1xf32>
    %54 = arith.subf %48, %53 : vector<8x1xf32>
    %55 = vector.extract_strided_slice %54 {offsets = [0, 0], sizes = [4, 1], strides = [1, 1]} : vector<8x1xf32> to vector<4x1xf32>
    %cst_26 = arith.constant dense<0xFF800000> : vector<1xf32>
    %56 = vector.multi_reduction <maximumf>, %55, %cst_26 [0] : vector<4x1xf32> to vector<1xf32>
    %57 = vector.shape_cast %56 : vector<1xf32> to vector<1x1xf32>
    %58 = vector.broadcast %57 : vector<1x1xf32> to vector<4x1xf32>
    %59 = arith.subf %55, %58 : vector<4x1xf32>
    %60 = math.exp %59 : vector<4x1xf32>
    %cst_27 = arith.constant dense<0.000000e+00> : vector<1xf32>
    %61 = vector.multi_reduction <add>, %60, %cst_27 [0] : vector<4x1xf32> to vector<1xf32>
    %62 = vector.shape_cast %61 : vector<1xf32> to vector<1x1xf32>
    %63 = vector.broadcast %62 : vector<1x1xf32> to vector<4x1xf32>
    %64 = arith.divf %60, %63 : vector<4x1xf32>
    %c0_28 = arith.constant 0 : index
    %c0_29 = arith.constant 0 : index
    %c0_30 = arith.constant 0 : index
    %65 = vector.load %arg8[%c0_28, %c0_29, %c0_30] : memref<2x4x1xf32, #tpu.memory_space<vmem>>, vector<1x4x1xf32>
    %66 = vector.shape_cast %65 : vector<1x4x1xf32> to vector<4x1xf32>
    %67 = vector.shape_cast %64 : vector<4x1xf32> to vector<1x4x1xf32>
    tpu.vector_store %arg8[%c0_28, %c0_29, %c0_30], %67 {strides = array<i32>} : memref<2x4x1xf32, #tpu.memory_space<vmem>>, vector<1x4x1xf32>,
    %68 = vector.extract_strided_slice %54 {offsets = [4, 0], sizes = [4, 1], strides = [1, 1]} : vector<8x1xf32> to vector<4x1xf32>
    %cst_31 = arith.constant dense<0xFF800000> : vector<1xf32>
    %69 = vector.multi_reduction <maximumf>, %68, %cst_31 [0] : vector<4x1xf32> to vector<1xf32>
    %70 = vector.shape_cast %69 : vector<1xf32> to vector<1x1xf32>
    %71 = vector.broadcast %70 : vector<1x1xf32> to vector<4x1xf32>
    %72 = arith.subf %68, %71 : vector<4x1xf32>
    %73 = math.exp %72 : vector<4x1xf32>
    %cst_32 = arith.constant dense<0.000000e+00> : vector<1xf32>
    %74 = vector.multi_reduction <add>, %73, %cst_32 [0] : vector<4x1xf32> to vector<1xf32>
    %75 = vector.shape_cast %74 : vector<1xf32> to vector<1x1xf32>
    %76 = vector.broadcast %75 : vector<1x1xf32> to vector<4x1xf32>
    %77 = arith.divf %73, %76 : vector<4x1xf32>
    %c1 = arith.constant 1 : index
    %c0_33 = arith.constant 0 : index
    %c0_34 = arith.constant 0 : index
    %78 = vector.load %arg8[%c1, %c0_33, %c0_34] : memref<2x4x1xf32, #tpu.memory_space<vmem>>, vector<1x4x1xf32>
    %79 = vector.shape_cast %78 : vector<1x4x1xf32> to vector<4x1xf32>
    %80 = vector.shape_cast %77 : vector<4x1xf32> to vector<1x4x1xf32>
    tpu.vector_store %arg8[%c1, %c0_33, %c0_34], %80 {strides = array<i32>} : memref<2x4x1xf32, #tpu.memory_space<vmem>>, vector<1x4x1xf32>,
    return
  }
  func.func @transform_0(%arg0: i32) -> (i32, i32) {
    %c0_i32 = arith.constant 0 : i32
    %c0_i32_0 = arith.constant 0 : i32
    return %arg0, %c0_i32 : i32, i32
  }
  func.func @transform_1(%arg0: i32) -> (i32, i32) {
    %c0_i32 = arith.constant 0 : i32
    %c0_i32_0 = arith.constant 0 : i32
    return %arg0, %c0_i32 : i32, i32
  }
  func.func @transform_2(%arg0: i32) -> (i32, i32) {
    %c0_i32 = arith.constant 0 : i32
    %c0_i32_0 = arith.constant 0 : i32
    return %arg0, %c0_i32 : i32, i32
  }
  func.func @transform_3(%arg0: i32) -> (i32, i32) {
    %c0_i32 = arith.constant 0 : i32
    %c0_i32_0 = arith.constant 0 : i32
    return %arg0, %c0_i32 : i32, i32
  }
  func.func @transform_4(%arg0: i32) -> (i32, i32) {
    %c0_i32 = arith.constant 0 : i32
    %c0_i32_0 = arith.constant 0 : i32
    %c0_i32_1 = arith.constant 0 : i32
    return %c0_i32, %c0_i32_0 : i32, i32
  }
  func.func @transform_5(%arg0: i32) -> (i32, i32) {
    %c0_i32 = arith.constant 0 : i32
    %c0_i32_0 = arith.constant 0 : i32
    %c0_i32_1 = arith.constant 0 : i32
    return %c0_i32, %c0_i32_0 : i32, i32
  }
  func.func @transform_6(%arg0: i32) -> (i32, i32) {
    %c0_i32 = arith.constant 0 : i32
    %c0_i32_0 = arith.constant 0 : i32
    %c0_i32_1 = arith.constant 0 : i32
    return %c0_i32, %c0_i32_0 : i32, i32
  }
  func.func @transform_7(%arg0: i32) -> (i32, i32, i32) {
    %c0_i32 = arith.constant 0 : i32
    %c0_i32_0 = arith.constant 0 : i32
    %c0_i32_1 = arith.constant 0 : i32
    return %arg0, %c0_i32, %c0_i32_0 : i32, i32, i32
  }
}

</mosaic_0001>

<llo_original>
// kernel: tpu_custom_call.1
$region0: #{tpu_custom_call.1}
  #allocation0 [shape = 'u32[]', space=smem, size = 0x4, offset = 0x4, fixed_abs, tag = 'smem constant byte address 0x4 - core index']
  #allocation1 [shape = 'u32[144,128]{1,0:T(1,128)}', space=vmem, size = 0x12000, scoped, tag = 'internal scratch']
  %s0 = inlined_call_operand.vmem [shape: f32[8,32], index: 0, kind: input, shape index: {}]
  %s1 = inlined_call_operand.vmem [shape: f32[2,32], index: 1, kind: input, shape index: {}]
  %s2 = inlined_call_operand.vmem [shape: s32[8,1], index: 2, kind: input, shape index: {}]
  %s3 = inlined_call_operand.vmem [shape: f32[2,128], index: 3, kind: input, shape index: {}]
  %s4 = inlined_call_operand.hbm [shape: f32[32,32], index: 4, kind: input, shape index: {}]
  %s5 = inlined_call_operand.hbm [shape: f32[32,32], index: 5, kind: input, shape index: {}]
  %s6 = inlined_call_operand.hbm [shape: f32[32,128], index: 6, kind: input, shape index: {}]
  %s7 = inlined_call_operand.vmem [shape: f32[2,4,1], index: 7, kind: output, shape index: {}]
  %s8 = sld [smem:[#allocation0]]
  $region50: #{tpu_custom_call.1} parent=0
    _
  %s10 = ssub.s32 1, %s8
  %s11 = scalar_select 0, %s10, %s8
  $region1: #{tpu_custom_call.1} parent=0
    #allocation2 [shape = 'u8[16384]{0}', space=vmem, size = 0x4000, scoped, tag = 'input window, operand 4, single buffered']
    #allocation3 [shape = 's32[1]{0}', space=sflag, size = 0x4, scoped, tag = 'scoped memory for tpu_custom_call.1']
    #allocation4 [shape = 'u8[16384]{0}', space=vmem, size = 0x4000, scoped, tag = 'input window, operand 5, single buffered']
    #allocation5 [shape = 's32[1]{0}', space=sflag, size = 0x4, scoped, tag = 'scoped memory for tpu_custom_call.1']
    #allocation6 [shape = 'u8[16384]{0}', space=vmem, size = 0x4000, scoped, tag = 'input window, operand 6, single buffered']
    %12 = vsyncpa [#allocation3], 0
    %13 = vsyncpa [#allocation5], 0
    // Predicated region
    $region2: #{tpu_custom_call.1} parent=1 // pred_check
      _
    $region3: #{tpu_custom_call.1} parent=1 // pred_check_branch
      %15 = sbr.rel (0) target = $region5
    $region4: #{tpu_custom_call.1} parent=1 // pred_region
      _
    $region5: #{tpu_custom_call.1} parent=1 // pred_fallthru
      _
    // Predicated region
    $region6: #{tpu_custom_call.1} parent=1 // pred_check
      _
    $region7: #{tpu_custom_call.1} parent=1 // pred_check_branch
      %17 = sbr.rel (0) target = $region9
    $region8: #{tpu_custom_call.1} parent=1 // pred_region
      _
    $region9: #{tpu_custom_call.1} parent=1 // pred_fallthru
      _
    // Predicated region
    $region10: #{tpu_custom_call.1} parent=1 // pred_check
      _
    $region11: #{tpu_custom_call.1} parent=1 // pred_check_branch
      %19 = sbr.rel (0) target = $region13
    $region12: #{tpu_custom_call.1} parent=1 // pred_region
      _
    $region13: #{tpu_custom_call.1} parent=1 // pred_fallthru
      _
    // Predicated region
    $region14: #{tpu_custom_call.1} parent=1 // pred_check
      _
    $region15: #{tpu_custom_call.1} parent=1 // pred_check_branch
      %21 = sbr.rel (0) target = $region17
    $region16: #{tpu_custom_call.1} parent=1 // pred_region
      _
    $region17: #{tpu_custom_call.1} parent=1 // pred_fallthru
      _
    // Predicated region
    $region18: #{tpu_custom_call.1} parent=1 // pred_check
      _
    $region19: #{tpu_custom_call.1} parent=1 // pred_check_branch
      %23 = sbr.rel (0) target = $region21
    $region20: #{tpu_custom_call.1} parent=1 // pred_region
      %s25 = ssub.s32 512, 512
      %26 = vsyncadd [#allocation3], %s25
      %s27 = sshll.u32 [#allocation2], 4
      %s28 = int_to_ptr.vmem [resolvable:$true] %s27
      %33 = dma.hbm_to_vmem [thread:$0]  %s4, 512, %s28, [#allocation3], 128, 128, 8
    $region21: #{tpu_custom_call.1} parent=1 // pred_fallthru
      _
    // Predicated region
    $region22: #{tpu_custom_call.1} parent=1 // pred_check
      _
    $region23: #{tpu_custom_call.1} parent=1 // pred_check_branch
      %35 = sbr.rel (0) target = $region25
    $region24: #{tpu_custom_call.1} parent=1 // pred_region
      %s37 = ssub.s32 512, 512
      %38 = vsyncadd [#allocation5], %s37
      %s39 = sshll.u32 [#allocation4], 4
      %s40 = int_to_ptr.vmem [resolvable:$true] %s39
      %45 = dma.hbm_to_vmem [thread:$0]  %s5, 512, %s40, [#allocation5], 128, 128, 8
    $region25: #{tpu_custom_call.1} parent=1 // pred_fallthru
      _
    // Predicated region
    $region26: #{tpu_custom_call.1} parent=1 // pred_check
      _
    $region27: #{tpu_custom_call.1} parent=1 // pred_check_branch
      %47 = sbr.rel (0) target = $region29
    $region28: #{tpu_custom_call.1} parent=1 // pred_region
      %s49 = ssub.s32 512, 512
      %50 = vsyncadd [#allocation5], %s49
      %s51 = sshll.u32 [#allocation6], 4
      %s52 = int_to_ptr.vmem [resolvable:$true] %s51
      %57 = dma.hbm_to_vmem [thread:$0]  %s6, 512, %s52, [#allocation5], 128, 128, 8
    $region29: #{tpu_custom_call.1} parent=1 // pred_fallthru
      _
    // Predicated region
    $region30: #{tpu_custom_call.1} parent=1 // pred_check
      _
    $region31: #{tpu_custom_call.1} parent=1 // pred_check_branch
      %59 = sbr.rel (0) target = $region33
    $region32: #{tpu_custom_call.1} parent=1 // pred_region
      %60 = dma.done [#allocation3], 512
    $region33: #{tpu_custom_call.1} parent=1 // pred_fallthru
      _
    // Predicated region
    $region34: #{tpu_custom_call.1} parent=1 // pred_check
      _
    $region35: #{tpu_custom_call.1} parent=1 // pred_check_branch
      %62 = sbr.rel (0) target = $region37
    $region36: #{tpu_custom_call.1} parent=1 // pred_region
      %63 = dma.done [#allocation5], 512
    $region37: #{tpu_custom_call.1} parent=1 // pred_fallthru
      _
    // Predicated region
    $region38: #{tpu_custom_call.1} parent=1 // pred_check
      _
    $region39: #{tpu_custom_call.1} parent=1 // pred_check_branch
      %65 = sbr.rel (0) target = $region41
    $region40: #{tpu_custom_call.1} parent=1 // pred_region
      %66 = dma.done [#allocation5], 512
    $region41: #{tpu_custom_call.1} parent=1 // pred_fallthru
      _
    %v67 = vlaneseq
    %v68 = vshrl.u32 %v67, 7
    %v69 = vlaneseq
    %v70 = vand.u32 %v69, 127
    %v71 = vmul.u32 %v70, 4
    %vm72 = vcmp.ge.s32.totalorder %v68, %v71
    %v73 = vadd.s32 %v70, 1
    %v74 = vmul.u32 %v73, 4
    %vm75 = vcmp.lt.s32.totalorder %v68, %v74
    %vm76 = vmand %vm72, %vm75
    %v77 = vsel %vm76, 1, 0
    %v78 = vcvt.s32.f32 %v77
    %v79 = vld [vmem:[%s0] sm:$0xff]
    %v80 = vld [vmem:[#allocation2] sm:$0xff]
    %v81 = vld [vmem:[#allocation2 + $0x8] sm:$0xff]
    %v82 = vld [vmem:[#allocation2 + $0x10] sm:$0xff]
    %v83 = vld [vmem:[#allocation2 + $0x18] sm:$0xff]
    %vm84 = vcmask 261120
    %v86 = vsel %vm84, %v79, 0
    %88 = vmatprep.subr.mxu0 0.0
    %89 = vmatpush1.msra.mxu0 %v80
    %90 = vmatprep.subr.mxu0 0.0
    %91 = vmatpush1.msra.mxu0 %v81
    %92 = vmatprep.subr.mxu0 0.0
    %93 = vmatpush1.msra.mxu0 %v82
    %94 = vmatprep.subr.mxu0 0.0
    %95 = vmatpush1.msra.mxu0 %v83
    %96 = vmatprep.subr.mxu0 0.0
    %97 = vmatpush1.msra.mxu0 0.0
    %98 = vmatprep.subr.mxu0 0.0
    %99 = vmatpush1.msra.mxu0 0.0
    %100 = vmatprep.subr.mxu0 0.0
    %101 = vmatpush1.msra.mxu0 0.0
    %102 = vmatprep.subr.mxu0 0.0
    %103 = vmatpush1.msra.mxu0 0.0
    %104 = vmatprep.subr.mxu0 0.0
    %105 = vmatpush1.msra.mxu0 0.0
    %106 = vmatprep.subr.mxu0 0.0
    %107 = vmatpush1.msra.mxu0 0.0
    %108 = vmatprep.subr.mxu0 0.0
    %109 = vmatpush1.msra.mxu0 0.0
    %110 = vmatprep.subr.mxu0 0.0
    %111 = vmatpush1.msra.mxu0 0.0
    %112 = vmatprep.subr.mxu0 0.0
    %113 = vmatpush1.msra.mxu0 0.0
    %114 = vmatprep.subr.mxu0 0.0
    %115 = vmatpush1.msra.mxu0 0.0
    %116 = vmatprep.subr.mxu0 0.0
    %117 = vmatpush1.msra.mxu0 0.0
    %118 = vmatprep.subr.mxu0 0.0
    %119 = vmatpush1.msra.mxu0 0.0
    %120 = vmatprep.subr.mxu0 0.0
    %121 = vmatpush1.msra.mxu0 0.0
    %122 = vmatprep.subr.mxu0 0.0
    %123 = vmatpush1.msra.mxu0 0.0
    %124 = vmatprep.subr.mxu0 0.0
    %125 = vmatpush1.msra.mxu0 0.0
    %126 = vmatprep.subr.mxu0 0.0
    %127 = vmatpush1.msra.mxu0 0.0
    %128 = vmatprep.subr.mxu0 0.0
    %129 = vmatpush1.msra.mxu0 0.0
    %130 = vmatprep.subr.mxu0 0.0
    %131 = vmatpush1.msra.mxu0 0.0
    %132 = vmatprep.subr.mxu0 0.0
    %133 = vmatpush1.msra.mxu0 0.0
    %134 = vmatprep.subr.mxu0 0.0
    %135 = vmatpush1.msra.mxu0 0.0
    %136 = vmatprep.subr.mxu0 0.0
    %137 = vmatpush1.msra.mxu0 0.0
    %138 = vmatprep.subr.mxu0 0.0
    %139 = vmatpush1.msra.mxu0 0.0
    %140 = vmatprep.subr.mxu0 0.0
    %141 = vmatpush1.msra.mxu0 0.0
    %142 = vmatprep.subr.mxu0 0.0
    %143 = vmatpush1.msra.mxu0 0.0
    %144 = vmatprep.subr.mxu0 0.0
    %145 = vmatpush1.msra.mxu0 0.0
    %146 = vmatprep.subr.mxu0 0.0
    %147 = vmatpush1.msra.mxu0 0.0
    %148 = vmatprep.subr.mxu0 0.0
    %149 = vmatpush1.msra.mxu0 0.0
    %150 = vmatprep.subr.mxu0 0.0
    %151 = vmatpush1.msra.mxu0 0.0
    %152 = vmatprep.mubr.f32.mxu0 0.0
    %153 = vmatmul.mubr.f32.gmra.mrb[0].mxu0 %v86
    %v154 = vpop.f32.mrb[0].mxu0
    %v155 = vadd.f32 0.0, %v154
    %v156 = vpop.f32.mrb[0].mxu0
    %157 = vdwg.mxu0
    %v158 = vld [vmem:[%s1] sm:$0x3]
    %v159 = vld [vmem:[#allocation4] sm:$0xff]
    %v160 = vld [vmem:[#allocation4 + $0x8] sm:$0xff]
    %v161 = vld [vmem:[#allocation4 + $0x10] sm:$0xff]
    %v162 = vld [vmem:[#allocation4 + $0x18] sm:$0xff]
    %v164 = vsel %vm84, %v158, 0
    %166 = vmatprep.subr.mxu0 0.0
    %167 = vmatpush1.msra.mxu0 %v159
    %168 = vmatprep.subr.mxu0 0.0
    %169 = vmatpush1.msra.mxu0 %v160
    %170 = vmatprep.subr.mxu0 0.0
    %171 = vmatpush1.msra.mxu0 %v161
    %172 = vmatprep.subr.mxu0 0.0
    %173 = vmatpush1.msra.mxu0 %v162
    %174 = vmatprep.subr.mxu0 0.0
    %175 = vmatpush1.msra.mxu0 0.0
    %176 = vmatprep.subr.mxu0 0.0
    %177 = vmatpush1.msra.mxu0 0.0
    %178 = vmatprep.subr.mxu0 0.0
    %179 = vmatpush1.msra.mxu0 0.0
    %180 = vmatprep.subr.mxu0 0.0
    %181 = vmatpush1.msra.mxu0 0.0
    %182 = vmatprep.subr.mxu0 0.0
    %183 = vmatpush1.msra.mxu0 0.0
    %184 = vmatprep.subr.mxu0 0.0
    %185 = vmatpush1.msra.mxu0 0.0
    %186 = vmatprep.subr.mxu0 0.0
    %187 = vmatpush1.msra.mxu0 0.0
    %188 = vmatprep.subr.mxu0 0.0
    %189 = vmatpush1.msra.mxu0 0.0
    %190 = vmatprep.subr.mxu0 0.0
    %191 = vmatpush1.msra.mxu0 0.0
    %192 = vmatprep.subr.mxu0 0.0
    %193 = vmatpush1.msra.mxu0 0.0
    %194 = vmatprep.subr.mxu0 0.0
    %195 = vmatpush1.msra.mxu0 0.0
    %196 = vmatprep.subr.mxu0 0.0
    %197 = vmatpush1.msra.mxu0 0.0
    %198 = vmatprep.subr.mxu0 0.0
    %199 = vmatpush1.msra.mxu0 0.0
    %200 = vmatprep.subr.mxu0 0.0
    %201 = vmatpush1.msra.mxu0 0.0
    %202 = vmatprep.subr.mxu0 0.0
    %203 = vmatpush1.msra.mxu0 0.0
    %204 = vmatprep.subr.mxu0 0.0
    %205 = vmatpush1.msra.mxu0 0.0
    %206 = vmatprep.subr.mxu0 0.0
    %207 = vmatpush1.msra.mxu0 0.0
    %208 = vmatprep.subr.mxu0 0.0
    %209 = vmatpush1.msra.mxu0 0.0
    %210 = vmatprep.subr.mxu0 0.0
    %211 = vmatpush1.msra.mxu0 0.0
    %212 = vmatprep.subr.mxu0 0.0
    %213 = vmatpush1.msra.mxu0 0.0
    %214 = vmatprep.subr.mxu0 0.0
    %215 = vmatpush1.msra.mxu0 0.0
    %216 = vmatprep.subr.mxu0 0.0
    %217 = vmatpush1.msra.mxu0 0.0
    %218 = vmatprep.subr.mxu0 0.0
    %219 = vmatpush1.msra.mxu0 0.0
    %220 = vmatprep.subr.mxu0 0.0
    %221 = vmatpush1.msra.mxu0 0.0
    %222 = vmatprep.subr.mxu0 0.0
    %223 = vmatpush1.msra.mxu0 0.0
    %224 = vmatprep.subr.mxu0 0.0
    %225 = vmatpush1.msra.mxu0 0.0
    %226 = vmatprep.subr.mxu0 0.0
    %227 = vmatpush1.msra.mxu0 0.0
    %228 = vmatprep.subr.mxu0 0.0
    %229 = vmatpush1.msra.mxu0 0.0
    %230 = vmatprep.mubr.f32.mxu0 0.0
    %231 = vmatmul.mubr.f32.gmra.mrb[0].mxu0 %v164
    %v232 = vpop.f32.mrb[0].mxu0
    %v233 = vadd.f32 0.0, %v232
    %v234 = vpop.f32.mrb[0].mxu0
    %235 = vdwg.mxu0
    %vm236 = vcmask 15360
    %v238 = vsel %vm236, %v78, 0
    %vm240 = vcmask 1041408
    %v242 = vsel %vm240, %v233, 0
    %244 = vmatprep.subr.mxu0 0.0
    %245 = vmatpush1.msra.mxu0 %v242
    %246 = vmatprep.subr.mxu0 0.0
    %247 = vmatpush1.msra.mxu0 0.0
    %248 = vmatprep.subr.mxu0 0.0
    %249 = vmatpush1.msra.mxu0 0.0
    %250 = vmatprep.subr.mxu0 0.0
    %251 = vmatpush1.msra.mxu0 0.0
    %252 = vmatprep.subr.mxu0 0.0
    %253 = vmatpush1.msra.mxu0 0.0
    %254 = vmatprep.subr.mxu0 0.0
    %255 = vmatpush1.msra.mxu0 0.0
    %256 = vmatprep.subr.mxu0 0.0
    %257 = vmatpush1.msra.mxu0 0.0
    %258 = vmatprep.subr.mxu0 0.0
    %259 = vmatpush1.msra.mxu0 0.0
    %260 = vmatprep.subr.mxu0 0.0
    %261 = vmatpush1.msra.mxu0 0.0
    %262 = vmatprep.subr.mxu0 0.0
    %263 = vmatpush1.msra.mxu0 0.0
    %264 = vmatprep.subr.mxu0 0.0
    %265 = vmatpush1.msra.mxu0 0.0
    %266 = vmatprep.subr.mxu0 0.0
    %267 = vmatpush1.msra.mxu0 0.0
    %268 = vmatprep.subr.mxu0 0.0
    %269 = vmatpush1.msra.mxu0 0.0
    %270 = vmatprep.subr.mxu0 0.0
    %271 = vmatpush1.msra.mxu0 0.0
    %272 = vmatprep.subr.mxu0 0.0
    %273 = vmatpush1.msra.mxu0 0.0
    %274 = vmatprep.subr.mxu0 0.0
    %275 = vmatpush1.msra.mxu0 0.0
    %276 = vmatprep.subr.mxu0 0.0
    %277 = vmatpush1.msra.mxu0 0.0
    %278 = vmatprep.subr.mxu0 0.0
    %279 = vmatpush1.msra.mxu0 0.0
    %280 = vmatprep.subr.mxu0 0.0
    %281 = vmatpush1.msra.mxu0 0.0
    %282 = vmatprep.subr.mxu0 0.0
    %283 = vmatpush1.msra.mxu0 0.0
    %284 = vmatprep.subr.mxu0 0.0
    %285 = vmatpush1.msra.mxu0 0.0
    %286 = vmatprep.subr.mxu0 0.0
    %287 = vmatpush1.msra.mxu0 0.0
    %288 = vmatprep.subr.mxu0 0.0
    %289 = vmatpush1.msra.mxu0 0.0
    %290 = vmatprep.subr.mxu0 0.0
    %291 = vmatpush1.msra.mxu0 0.0
    %292 = vmatprep.subr.mxu0 0.0
    %293 = vmatpush1.msra.mxu0 0.0
    %294 = vmatprep.subr.mxu0 0.0
    %295 = vmatpush1.msra.mxu0 0.0
    %296 = vmatprep.subr.mxu0 0.0
    %297 = vmatpush1.msra.mxu0 0.0
    %298 = vmatprep.subr.mxu0 0.0
    %299 = vmatpush1.msra.mxu0 0.0
    %300 = vmatprep.subr.mxu0 0.0
    %301 = vmatpush1.msra.mxu0 0.0
    %302 = vmatprep.subr.mxu0 0.0
    %303 = vmatpush1.msra.mxu0 0.0
    %304 = vmatprep.subr.mxu0 0.0
    %305 = vmatpush1.msra.mxu0 0.0
    %306 = vmatprep.subr.mxu0 0.0
    %307 = vmatpush1.msra.mxu0 0.0
    %308 = vmatprep.mubr.f32.mxu0 0.0
    %309 = vmatmul.mubr.f32.gmra.mrb[0].mxu0 %v238
    %v310 = vpop.f32.mrb[0].mxu0
    %v311 = vadd.f32 0.0, %v310
    %v312 = vpop.f32.mrb[0].mxu0
    %313 = vdwg.mxu0
    %v314 = vmul.f32 %v155, %v311
    %v315 = vtanh.pop %v314
    %v316 = vld [vmem:[#allocation6] sm:$0xff]
    %v317 = vld [vmem:[#allocation6 + $0x8] sm:$0xff]
    %v318 = vld [vmem:[#allocation6 + $0x10] sm:$0xff]
    %v319 = vld [vmem:[#allocation6 + $0x18] sm:$0xff]
    %v321 = vsel %vm84, %v315, 0
    %323 = vmatprep.subr.mxu0 0.0
    %324 = vmatpush1.msra.mxu0 %v316
    %325 = vmatprep.subr.mxu0 0.0
    %326 = vmatpush1.msra.mxu0 %v317
    %327 = vmatprep.subr.mxu0 0.0
    %328 = vmatpush1.msra.mxu0 %v318
    %329 = vmatprep.subr.mxu0 0.0
    %330 = vmatpush1.msra.mxu0 %v319
    %331 = vmatprep.subr.mxu0 0.0
    %332 = vmatpush1.msra.mxu0 0.0
    %333 = vmatprep.subr.mxu0 0.0
    %334 = vmatpush1.msra.mxu0 0.0
    %335 = vmatprep.subr.mxu0 0.0
    %336 = vmatpush1.msra.mxu0 0.0
    %337 = vmatprep.subr.mxu0 0.0
    %338 = vmatpush1.msra.mxu0 0.0
    %339 = vmatprep.subr.mxu0 0.0
    %340 = vmatpush1.msra.mxu0 0.0
    %341 = vmatprep.subr.mxu0 0.0
    %342 = vmatpush1.msra.mxu0 0.0
    %343 = vmatprep.subr.mxu0 0.0
    %344 = vmatpush1.msra.mxu0 0.0
    %345 = vmatprep.subr.mxu0 0.0
    %346 = vmatpush1.msra.mxu0 0.0
    %347 = vmatprep.subr.mxu0 0.0
    %348 = vmatpush1.msra.mxu0 0.0
    %349 = vmatprep.subr.mxu0 0.0
    %350 = vmatpush1.msra.mxu0 0.0
    %351 = vmatprep.subr.mxu0 0.0
    %352 = vmatpush1.msra.mxu0 0.0
    %353 = vmatprep.subr.mxu0 0.0
    %354 = vmatpush1.msra.mxu0 0.0
    %355 = vmatprep.subr.mxu0 0.0
    %356 = vmatpush1.msra.mxu0 0.0
    %357 = vmatprep.subr.mxu0 0.0
    %358 = vmatpush1.msra.mxu0 0.0
    %359 = vmatprep.subr.mxu0 0.0
    %360 = vmatpush1.msra.mxu0 0.0
    %361 = vmatprep.subr.mxu0 0.0
    %362 = vmatpush1.msra.mxu0 0.0
    %363 = vmatprep.subr.mxu0 0.0
    %364 = vmatpush1.msra.mxu0 0.0
    %365 = vmatprep.subr.mxu0 0.0
    %366 = vmatpush1.msra.mxu0 0.0
    %367 = vmatprep.subr.mxu0 0.0
    %368 = vmatpush1.msra.mxu0 0.0
    %369 = vmatprep.subr.mxu0 0.0
    %370 = vmatpush1.msra.mxu0 0.0
    %371 = vmatprep.subr.mxu0 0.0
    %372 = vmatpush1.msra.mxu0 0.0
    %373 = vmatprep.subr.mxu0 0.0
    %374 = vmatpush1.msra.mxu0 0.0
    %375 = vmatprep.subr.mxu0 0.0
    %376 = vmatpush1.msra.mxu0 0.0
    %377 = vmatprep.subr.mxu0 0.0
    %378 = vmatpush1.msra.mxu0 0.0
    %379 = vmatprep.subr.mxu0 0.0
    %380 = vmatpush1.msra.mxu0 0.0
    %381 = vmatprep.subr.mxu0 0.0
    %382 = vmatpush1.msra.mxu0 0.0
    %383 = vmatprep.subr.mxu0 0.0
    %384 = vmatpush1.msra.mxu0 0.0
    %385 = vmatprep.subr.mxu0 0.0
    %386 = vmatpush1.msra.mxu0 0.0
    %387 = vmatprep.mubr.f32.mxu0 0.0
    %388 = vmatmul.mubr.f32.gmra.mrb[0].mxu0 %v321
    %v389 = vpop.f32.mrb[0].mxu0
    %v390 = vadd.f32 0.0, %v389
    %v391 = vpop.f32.mrb[0].mxu0
    %392 = vdwg.mxu0
    %393 = vmax.xlane.f32.xlu0 %v390
    %v394 = vpop.xlane.xlu0 %393
    %v395 = vsub.f32 %v390, %v394
    %v396 = vmul.f32 %v395, 1.442695
    %v397 = vpow.pop %v396
    %398 = vadd.xlane.f32.xlu0 %v397
    %v399 = vpop.xlane.xlu0 %398
    %v400 = vrcp.pop %v399
    %v401 = vmul.f32 %v397, %v400
    %v402 = vld [vmem:[%s3] sm:$0x3]
    %v404 = vsel %vm240, %v402, 0
    %406 = vmatprep.subr.mxu0 0.0
    %407 = vmatpush1.msra.mxu0 %v404
    %408 = vmatprep.subr.mxu0 0.0
    %409 = vmatpush1.msra.mxu0 0.0
    %410 = vmatprep.subr.mxu0 0.0
    %411 = vmatpush1.msra.mxu0 0.0
    %412 = vmatprep.subr.mxu0 0.0
    %413 = vmatpush1.msra.mxu0 0.0
    %414 = vmatprep.subr.mxu0 0.0
    %415 = vmatpush1.msra.mxu0 0.0
    %416 = vmatprep.subr.mxu0 0.0
    %417 = vmatpush1.msra.mxu0 0.0
    %418 = vmatprep.subr.mxu0 0.0
    %419 = vmatpush1.msra.mxu0 0.0
    %420 = vmatprep.subr.mxu0 0.0
    %421 = vmatpush1.msra.mxu0 0.0
    %422 = vmatprep.subr.mxu0 0.0
    %423 = vmatpush1.msra.mxu0 0.0
    %424 = vmatprep.subr.mxu0 0.0
    %425 = vmatpush1.msra.mxu0 0.0
    %426 = vmatprep.subr.mxu0 0.0
    %427 = vmatpush1.msra.mxu0 0.0
    %428 = vmatprep.subr.mxu0 0.0
    %429 = vmatpush1.msra.mxu0 0.0
    %430 = vmatprep.subr.mxu0 0.0
    %431 = vmatpush1.msra.mxu0 0.0
    %432 = vmatprep.subr.mxu0 0.0
    %433 = vmatpush1.msra.mxu0 0.0
    %434 = vmatprep.subr.mxu0 0.0
    %435 = vmatpush1.msra.mxu0 0.0
    %436 = vmatprep.subr.mxu0 0.0
    %437 = vmatpush1.msra.mxu0 0.0
    %438 = vmatprep.subr.mxu0 0.0
    %439 = vmatpush1.msra.mxu0 0.0
    %440 = vmatprep.subr.mxu0 0.0
    %441 = vmatpush1.msra.mxu0 0.0
    %442 = vmatprep.subr.mxu0 0.0
    %443 = vmatpush1.msra.mxu0 0.0
    %444 = vmatprep.subr.mxu0 0.0
    %445 = vmatpush1.msra.mxu0 0.0
    %446 = vmatprep.subr.mxu0 0.0
    %447 = vmatpush1.msra.mxu0 0.0
    %448 = vmatprep.subr.mxu0 0.0
    %449 = vmatpush1.msra.mxu0 0.0
    %450 = vmatprep.subr.mxu0 0.0
    %451 = vmatpush1.msra.mxu0 0.0
    %452 = vmatprep.subr.mxu0 0.0
    %453 = vmatpush1.msra.mxu0 0.0
    %454 = vmatprep.subr.mxu0 0.0
    %455 = vmatpush1.msra.mxu0 0.0
    %456 = vmatprep.subr.mxu0 0.0
    %457 = vmatpush1.msra.mxu0 0.0
    %458 = vmatprep.subr.mxu0 0.0
    %459 = vmatpush1.msra.mxu0 0.0
    %460 = vmatprep.subr.mxu0 0.0
    %461 = vmatpush1.msra.mxu0 0.0
    %462 = vmatprep.subr.mxu0 0.0
    %463 = vmatpush1.msra.mxu0 0.0
    %464 = vmatprep.subr.mxu0 0.0
    %465 = vmatpush1.msra.mxu0 0.0
    %466 = vmatprep.subr.mxu0 0.0
    %467 = vmatpush1.msra.mxu0 0.0
    %468 = vmatprep.subr.mxu0 0.0
    %469 = vmatpush1.msra.mxu0 0.0
    %470 = vmatprep.mubr.f32.mxu0 0.0
    %471 = vmatmul.mubr.f32.gmra.mrb[0].mxu0 %v238
    %v472 = vpop.f32.mrb[0].mxu0
    %v473 = vadd.f32 0.0, %v472
    %v474 = vpop.f32.mrb[0].mxu0
    %475 = vdwg.mxu0
    %v476 = vmul.f32 %v401, %v473
    %477 = vadd.xlane.f32.xlu0 %v476
    %v478 = vpop.xlane.xlu0 %477
    %v479 = vld [vmem:[%s2] sm:$0xff]
    %480 = vset.pattern.permute.xlu0 0
    %481 = vperm.xlu0 %480, %v479
    %v482 = vpop.permute.xlu0 %481
    %vm483 = vcmp.eq.s32.totalorder %v70, %v482
    %v484 = vsel %vm483, %v401, 0.0
    %485 = vadd.xlane.f32.xlu0 %v484
    %v486 = vpop.xlane.xlu0 %485
    %v487 = vsub.f32 %v478, %v486
    %v488 = vmul.f32 %v487, 0.5
    %v489 = vadd.f32 %v486, 1e-08
    %v490 = vlog2.pop %v489
    %v491 = vmul.f32 %v490, 0.6931472
    %v492 = vmul.f32 %v491, 0.5
    %v493 = vsub.f32 %v488, %v492
    %vm494 = vcmask 1043456
    %v495 = vsel %vm494, %v493, -inf
    %v496 = vrot.slane %v495, 4
    %v497 = vmax.f32 %v495, %v496
    %v498 = vrot.slane %v497, 2
    %v499 = vmax.f32 %v497, %v498
    %v500 = vrot.slane %v499, 1
    %v501 = vmax.f32 %v499, %v500
    %v502 = vsub.f32 %v493, %v501
    %v503 = vmul.f32 %v502, 1.442695
    %v504 = vpow.pop %v503
    %v505 = vsel %vm494, %v504, 0.0
    %v506 = vrot.slane %v505, 4
    %v507 = vadd.f32 %v505, %v506
    %v508 = vrot.slane %v507, 2
    %v509 = vadd.f32 %v507, %v508
    %v510 = vrot.slane %v509, 1
    %v511 = vadd.f32 %v509, %v510
    %v512 = vrcp.pop %v511
    %v513 = vmul.f32 %v504, %v512
    %vm514 = vcmask 3072
    %515 = vst.msk [vmem:[%s7] sm:$0xf] %vm514, %v513
    %vm516 = vcmask 1047556
    %v517 = vsel %vm516, %v493, -inf
    %v518 = vrot.slane %v517, 4
    %v519 = vmax.f32 %v517, %v518
    %v520 = vrot.slane %v519, 2
    %v521 = vmax.f32 %v519, %v520
    %v522 = vrot.slane %v521, 1
    %v523 = vmax.f32 %v521, %v522
    %v524 = vsub.f32 %v493, %v523
    %v525 = vmul.f32 %v524, 1.442695
    %v526 = vpow.pop %v525
    %v528 = vrot.slane %v526, 4
    %v530 = vsel %vm494, %v528, 0.0
    %v531 = vrot.slane %v530, 4
    %v532 = vadd.f32 %v530, %v531
    %v533 = vrot.slane %v532, 2
    %v534 = vadd.f32 %v532, %v533
    %v535 = vrot.slane %v534, 1
    %v536 = vadd.f32 %v534, %v535
    %v537 = vrcp.pop %v536
    %v538 = vmul.f32 %v526, %v537
    %s539 = scalar_lea.vmem %s7, 4
    %vm540 = vcmask 7172
    %541 = vst.msk [vmem:[%s539 - $0x4] sm:$0xf0] %vm540, %v538
    // Predicated region
    $region42: #{tpu_custom_call.1} parent=1 // pred_check
      _
    $region43: #{tpu_custom_call.1} parent=1 // pred_check_branch
      %543 = sbr.rel (0) target = $region45
    $region44: #{tpu_custom_call.1} parent=1 // pred_region
      _
    $region45: #{tpu_custom_call.1} parent=1 // pred_fallthru
      _
    // Predicated region
    $region46: #{tpu_custom_call.1} parent=1 // pred_check
      _
    $region47: #{tpu_custom_call.1} parent=1 // pred_check_branch
      %545 = sbr.rel (0) target = $region49
    $region48: #{tpu_custom_call.1} parent=1 // pred_region
      _
    $region49: #{tpu_custom_call.1} parent=1 // pred_fallthru
      _
    %546 = vsyncpa [#allocation3], 1
    %547 = vsyncpa [#allocation5], 1

</llo_original>
